<compile_context>
chip_gen: v6e
topology: v6e:2x2x1
jax: 0.10.0
libtpu: 0.0.40
codegen_flags: <defaults>
</compile_context>

<pallas_src>
import functools

import jax
import jax.numpy as jnp
from jax import lax
from jax.experimental import pallas as pl
from jax.experimental.pallas import tpu as pltpu


# ---------------------------------------------------------------------------
# Gram-matrix kernels
# ---------------------------------------------------------------------------
def _mask_cols(x, k, tm, m):
    """Zero out columns whose global index >= m (exact for a Gram sum)."""
    col = k * tm + lax.broadcasted_iota(jnp.int32, (1, x.shape[1]), 1)
    return jnp.where(col < m, x, jnp.zeros_like(x))


def _gram_accum(lhs, rhs, gram_ref, norm):
    """Shared accumulation body. Grid = (row_tiles, k_tiles); k is axis 1."""
    k = pl.program_id(1)

    @pl.when(k == 0)
    def _():
        gram_ref[...] = jnp.zeros_like(gram_ref)

    # lhs @ rhs.T on the MXU directly (contracting dims (1,1)); no explicit
    # transpose / XLU relayout per grid step.
    gram_ref[...] += lax.dot_general(
        lhs, rhs,
        dimension_numbers=(((1,), (1,)), ((), ())),
        preferred_element_type=jnp.float32,
    )

    @pl.when(k == pl.num_programs(1) - 1)
    def _():
        gram_ref[...] *= norm


def _gram_kernel_shared(feat_ref, gram_ref, *, norm, m, tm, mask):
    """Single row tile (tn == N): one feature stream used as lhs and rhs."""
    f = feat_ref[...]
    if mask:
        f = _mask_cols(f, pl.program_id(1), tm, m)
    _gram_accum(f, f, gram_ref, norm)


def _gram_kernel_tiled(feat_ref, gram_ref, *, norm, m, tm, tn, mask):
    """Row-tiled variant (tn < N): one (N, tm) stream; lhs rows sliced in-kernel."""
    i = pl.program_id(0)
    k = pl.program_id(1)
    rhs = feat_ref[...]                               # (N, tm)
    start = pl.multiple_of(i * tn, tn)                # tn is a multiple of 128
    lhs = feat_ref[pl.ds(start, tn), :]               # (tn, tm)
    if mask:
        rhs = _mask_cols(rhs, k, tm, m)
        lhs = _mask_cols(lhs, k, tm, m)
    _gram_accum(lhs, rhs, gram_ref, norm)


def _round_up(x, mult):
    return ((x + mult - 1) // mult) * mult


def _cdiv(a, b):
    return -(-a // b)


def gram_matrix_pallas(x_nchw, feat_dtype=None):
    """Pallas equivalent of torch gram_matrix: (f @ f.T) / (B*C*H*W).

    feat_dtype: optional streaming dtype for the feature matrix (e.g.
    jnp.bfloat16 halves HBM traffic at the native MXU rate; accumulation is
    always f32). Defaults to the input dtype for bit-faithful f32 results.
    """
    b, c, h, w = x_nchw.shape
    n = b * c
    m = h * w
    if feat_dtype is None:
        feat_dtype = x_nchw.dtype
    feat = x_nchw.reshape(n, m).astype(feat_dtype)
    bytes_per = jnp.dtype(feat_dtype).itemsize

    # --- output-row tiling (parallel axis; helps on v7x's 2 TensorCores) ----
    if n <= 256:
        tn = n
    elif n % 256 == 0:
        tn = 256
    elif n % 128 == 0:
        tn = 128
    else:
        tn = n
    n_row_tiles = n // tn

    # --- reduction tile: a conservative VMEM budget (safe on v5e/v6e scoped
    # limits and v7x's 64 MiB physical VMEM), then balance the k-steps so the
    # last tile is never a tiny remainder.
    budget = 24 * 1024 * 1024
    fixed = 2 * tn * n * 4                       # double-buffered f32 output block
    per_col = 2 * n * bytes_per                  # one double-buffered feature stream
    tm_cap = max(128, ((budget - fixed) // per_col) // 128 * 128)
    m128 = _round_up(m, 128)
    k_steps = _cdiv(m128, tm_cap)
    tm = max(128, _round_up(_cdiv(m128, k_steps), 128))
    mask = (m % tm) != 0                         # last tile has OOB columns

    norm = 1.0 / float(b * c * h * w)
    grid = (n_row_tiles, _cdiv(m, tm))

    in_specs = [pl.BlockSpec((n, tm), lambda i, k: (0, k))]
    if n_row_tiles == 1:
        kernel = functools.partial(_gram_kernel_shared,
                                   norm=norm, m=m, tm=tm, mask=mask)
    else:
        kernel = functools.partial(_gram_kernel_tiled,
                                   norm=norm, m=m, tm=tm, tn=tn, mask=mask)

    gram = pl.pallas_call(
        kernel,
        out_shape=jax.ShapeDtypeStruct((n, n), jnp.float32),
        grid_spec=pltpu.PrefetchScalarGridSpec(
            num_scalar_prefetch=0,
            grid=grid,
            in_specs=in_specs,
            # Resident across the reduction axis -> acts as the accumulator.
            out_specs=pl.BlockSpec((tn, n), lambda i, k: (i, 0)),
        ),
        compiler_params=pltpu.CompilerParams(
            dimension_semantics=("parallel", "arbitrary"),
            vmem_limit_bytes=48 * 1024 * 1024,   # actual use <= ~24 MiB
        ),
    )(feat)
    return gram


# ---------------------------------------------------------------------------
# Tiny MSE kernel on the (N, N) Gram (scalar result lands in SMEM)
# ---------------------------------------------------------------------------
def _mse_kernel(gram_ref, target_ref, loss_ref, *, inv_count):
    diff = gram_ref[...] - target_ref[...]
    loss_ref[0, 0] = jnp.sum(diff * diff) * inv_count


def mse_loss_pallas(gram, target):
    n0, n1 = gram.shape
    kernel = functools.partial(_mse_kernel, inv_count=1.0 / float(n0 * n1))
    loss = pl.pallas_call(
        kernel,
        out_shape=jax.ShapeDtypeStruct((1, 1), jnp.float32),
        in_specs=[pl.BlockSpec(memory_space=pltpu.MemorySpace.VMEM),
                  pl.BlockSpec(memory_space=pltpu.MemorySpace.VMEM)],
        out_specs=pl.BlockSpec(memory_space=pltpu.MemorySpace.SMEM),
    )(gram.astype(jnp.float32), target.astype(jnp.float32))
    return loss[0, 0]


# ---------------------------------------------------------------------------
# Module wrapper (matches the PyTorch StyleLoss semantics)
# ---------------------------------------------------------------------------
class StyleLoss:
    """JAX/Pallas equivalent of the PyTorch StyleLoss module."""

    def __init__(self, target_feature):
        # Gram-only kernel for the target (no dummy-target pass).
        self.target = gram_matrix_pallas(target_feature)
        self.loss = None

    def __call__(self, input_tensor):
        gram = gram_matrix_pallas(input_tensor)
        self.loss = mse_loss_pallas(gram, self.target)
        return input_tensor  # forward returns its input unchanged


# ---------------------------------------------------------------------------
# Reference + self-test
# ---------------------------------------------------------------------------
def _gram_ref(x):
    b, c, h, w = x.shape
    f = x.reshape(b * c, h * w).astype(jnp.float32)
    return (f @ f.T) / float(b * c * h * w)


if __name__ == "__main__":
    key = jax.random.PRNGKey(0)
    k1, k2, k3, k4 = jax.random.split(key, 4)

    # Small NCHW conv-feature shapes.
    target_feature = jax.random.normal(k1, (2, 4, 16, 16), jnp.float32)
    x = jax.random.normal(k2, (2, 4, 16, 16), jnp.float32)

    module = StyleLoss(target_feature)
    out = jax.block_until_ready(module(x))
    loss = jax.block_until_ready(module.loss)

    gram_r = _gram_ref(x)
    tgt_r = _gram_ref(target_feature)
    loss_r = jnp.mean((gram_r - tgt_r) ** 2)
    assert jnp.allclose(out, x), "forward must return its input unchanged"
    assert jnp.allclose(loss, loss_r, rtol=1e-5, atol=1e-6), (loss, loss_r)

    # Unaligned H*W path (in-kernel column masking, no HBM pad copy).
    x2 = jax.random.normal(k3, (1, 8, 10, 10), jnp.float32)
    gram2 = jax.block_until_ready(gram_matrix_pallas(x2))
    assert jnp.allclose(gram2, _gram_ref(x2), rtol=1e-5, atol=1e-6)

    # Row-tiled path (N = 384 > 256): in-kernel lhs slicing + masking.
    x3 = jax.random.normal(k4, (1, 384, 8, 8), jnp.float32)
    gram3 = jax.block_until_ready(gram_matrix_pallas(x3))
    assert jnp.allclose(gram3, _gram_ref(x3), rtol=1e-5, atol=1e-6)

    print("KERNEL_OK")
</pallas_src>

<mosaic_0001>
module attributes {stable_mosaic.version = 11 : i64} {
  func.func @_gram_kernel_shared(%arg0: i32, %arg1: i32, %arg2: memref<8x256xf32, #tpu.memory_space<vmem>>, %arg3: memref<8x8xf32, #tpu.memory_space<vmem>>) attributes {dimension_semantics = [#tpu.dimension_semantics<parallel>, #tpu.dimension_semantics<arbitrary>], iteration_bounds = array<i64: 1, 1>, scalar_prefetch = 0 : i64, scratch_operands = 0 : i64, tpu.core_type = #tpu.core_type<tc>, window_params = [{transform_indices = @transform_0, window_bounds = array<i64: 8, 256>}, {transform_indices = @transform_1, window_bounds = array<i64: 8, 8>}]} {
    %c0 = arith.constant 0 : index
    %c0_0 = arith.constant 0 : index
    %0 = vector.load %arg2[%c0, %c0_0] : memref<8x256xf32, #tpu.memory_space<vmem>>, vector<8x256xf32>
    %c0_i32 = arith.constant 0 : i32
    %1 = arith.cmpi eq, %arg1, %c0_i32 : i32
    %2 = arith.extui %1 : i1 to i32
    %c0_i32_1 = arith.constant 0 : i32
    %3 = arith.cmpi ne, %2, %c0_i32_1 : i32
    scf.if %3 {
      %cst_8 = arith.constant 0.000000e+00 : f32
      %11 = vector.broadcast %cst_8 : f32 to vector<8x8xf32>
      %c0_9 = arith.constant 0 : index
      %c0_10 = arith.constant 0 : index
      %12 = vector.load %arg3[%c0_9, %c0_10] : memref<8x8xf32, #tpu.memory_space<vmem>>, vector<8x8xf32>
      tpu.vector_store %arg3[%c0_9, %c0_10], %11 {strides = array<i32>} : memref<8x8xf32, #tpu.memory_space<vmem>>, vector<8x8xf32>,
    } else {
    }
    %c0_2 = arith.constant 0 : index
    %c0_3 = arith.constant 0 : index
    %4 = vector.load %arg3[%c0_2, %c0_3] : memref<8x8xf32, #tpu.memory_space<vmem>>, vector<8x8xf32>
    %cst = arith.constant dense<0.000000e+00> : vector<8x8xf32>
    %5 = tpu.matmul %0, %0, %cst {dimension_numbers = #tpu.dot_dimension_numbers<[1], [1], [0], [0], [0, 0, 1, 0], [], []>} : vector<8x256xf32>, vector<8x256xf32>, vector<8x8xf32> -> vector<8x8xf32>
    %6 = arith.addf %4, %5 : vector<8x8xf32>
    %c0_4 = arith.constant 0 : index
    %c0_5 = arith.constant 0 : index
    %7 = vector.load %arg3[%c0_4, %c0_5] : memref<8x8xf32, #tpu.memory_space<vmem>>, vector<8x8xf32>
    tpu.vector_store %arg3[%c0_4, %c0_5], %6 {strides = array<i32>} : memref<8x8xf32, #tpu.memory_space<vmem>>, vector<8x8xf32>,
    %c0_i32_6 = arith.constant 0 : i32
    %8 = arith.cmpi eq, %arg1, %c0_i32_6 : i32
    %9 = arith.extui %8 : i1 to i32
    %c0_i32_7 = arith.constant 0 : i32
    %10 = arith.cmpi ne, %9, %c0_i32_7 : i32
    scf.if %10 {
      %c0_8 = arith.constant 0 : index
      %c0_9 = arith.constant 0 : index
      %11 = vector.load %arg3[%c0_8, %c0_9] : memref<8x8xf32, #tpu.memory_space<vmem>>, vector<8x8xf32>
      %cst_10 = arith.constant 4.8828125E-4 : f32
      %12 = vector.broadcast %cst_10 : f32 to vector<8x8xf32>
      %13 = arith.mulf %11, %12 : vector<8x8xf32>
      %c0_11 = arith.constant 0 : index
      %c0_12 = arith.constant 0 : index
      %14 = vector.load %arg3[%c0_11, %c0_12] : memref<8x8xf32, #tpu.memory_space<vmem>>, vector<8x8xf32>
      tpu.vector_store %arg3[%c0_11, %c0_12], %13 {strides = array<i32>} : memref<8x8xf32, #tpu.memory_space<vmem>>, vector<8x8xf32>,
    } else {
    }
    return
  }
  func.func @transform_0(%arg0: i32, %arg1: i32) -> (i32, i32) {
    %c0_i32 = arith.constant 0 : i32
    %c0_i32_0 = arith.constant 0 : i32
    return %c0_i32, %arg1 : i32, i32
  }
  func.func @transform_1(%arg0: i32, %arg1: i32) -> (i32, i32) {
    %c0_i32 = arith.constant 0 : i32
    %c0_i32_0 = arith.constant 0 : i32
    return %arg0, %c0_i32 : i32, i32
  }
}

</mosaic_0001>

<llo_original>
// kernel: tpu_custom_call.1
$region0: #{tpu_custom_call.1}
  #allocation0 [shape = 'u32[]', space=smem, size = 0x4, offset = 0x4, fixed_abs, tag = 'smem constant byte address 0x4 - core index']
  #allocation1 [shape = 'u32[144,128]{1,0:T(1,128)}', space=vmem, size = 0x12000, scoped, tag = 'internal scratch']
  %s0 = inlined_call_operand.hbm [shape: f32[8,256], index: 0, kind: input, shape index: {}]
  %s1 = inlined_call_operand.hbm [shape: f32[8,8], index: 1, kind: output, shape index: {}]
  %s2 = sld [smem:[#allocation0]]
  $region26: #{tpu_custom_call.1} parent=0
    _
  %s4 = ssub.s32 1, %s2
  %s5 = scalar_select 0, %s4, %s2
  $region1: #{tpu_custom_call.1} parent=0
    #allocation2 [shape = 'u8[8192]{0}', space=vmem, size = 0x2000, scoped, tag = 'input window, operand 0, single buffered']
    #allocation3 [shape = 's32[1]{0}', space=sflag, size = 0x4, scoped, tag = 'scoped memory for tpu_custom_call.1']
    #allocation4 [shape = 's32[1]{0}', space=sflag, size = 0x4, scoped, tag = 'scoped memory for tpu_custom_call.1']
    #allocation5 [shape = 'u8[4096]{0}', space=vmem, size = 0x1000, scoped, tag = 'output window, operand 0, single buffered']
    %6 = vsyncpa [#allocation3], 0
    %7 = vsyncpa [#allocation4], 0
    // Predicated region
    $region2: #{tpu_custom_call.1} parent=1 // pred_check
      _
    $region3: #{tpu_custom_call.1} parent=1 // pred_check_branch
      %9 = sbr.rel (0) target = $region5
    $region4: #{tpu_custom_call.1} parent=1 // pred_region
      %s11 = ssub.s32 256, 256
      %12 = vsyncadd [#allocation3], %s11
      %s14 = sshll.u32 [#allocation2], 4
      %s15 = int_to_ptr.vmem [resolvable:$true] %s14
      %17 = dma.hbm_to_vmem [thread:$0]  %s0, 256, %s15, [#allocation3]
    $region5: #{tpu_custom_call.1} parent=1 // pred_fallthru
      _
    // Predicated region
    $region6: #{tpu_custom_call.1} parent=1 // pred_check
      _
    $region7: #{tpu_custom_call.1} parent=1 // pred_check_branch
      %19 = sbr.rel (0) target = $region9
    $region8: #{tpu_custom_call.1} parent=1 // pred_region
      %20 = dma.done [#allocation3], 256
    $region9: #{tpu_custom_call.1} parent=1 // pred_fallthru
      _
    %v21 = vld [vmem:[#allocation2] sm:$0xff]
    %v22 = vld [vmem:[#allocation2 + $0x8] sm:$0xff]
    %p23 = scmp.eq.s32.totalorder 0, 0
    // Predicated region
    $region10: #{tpu_custom_call.1} parent=1 // pred_check
      %p24 = pneg %p23
    $region11: #{tpu_custom_call.1} parent=1 // pred_check_branch
      %26 = sbr.rel (%p24) target = $region13
    $region12: #{tpu_custom_call.1} parent=1 // pred_region
      %vm27 = vcmask 64512
      %28 = vst.msk [vmem:[#allocation5] sm:$0xff] %vm27, 0.0
    $region13: #{tpu_custom_call.1} parent=1 // pred_fallthru
      _
    %v29 = vld [vmem:[#allocation5] sm:$0xff]
    %30 = vmatprep.subr.mxu0 0.0
    %31 = vmatpush1.xpose.msra.mxu0 0.0
    %32 = vmatprep.subr.mxu0 0.0
    %33 = vmatpush1.xpose.msra.mxu0 0.0
    %34 = vmatprep.subr.mxu0 0.0
    %35 = vmatpush1.xpose.msra.mxu0 0.0
    %36 = vmatprep.subr.mxu0 0.0
    %37 = vmatpush1.xpose.msra.mxu0 0.0
    %38 = vmatprep.subr.mxu0 0.0
    %39 = vmatpush1.xpose.msra.mxu0 0.0
    %40 = vmatprep.subr.mxu0 0.0
    %41 = vmatpush1.xpose.msra.mxu0 0.0
    %42 = vmatprep.subr.mxu0 0.0
    %43 = vmatpush1.xpose.msra.mxu0 0.0
    %44 = vmatprep.subr.mxu0 0.0
    %45 = vmatpush1.xpose.msra.mxu0 0.0
    %46 = vmatprep.subr.mxu0 0.0
    %47 = vmatpush1.xpose.msra.mxu0 0.0
    %48 = vmatprep.subr.mxu0 0.0
    %49 = vmatpush1.xpose.msra.mxu0 0.0
    %50 = vmatprep.subr.mxu0 0.0
    %51 = vmatpush1.xpose.msra.mxu0 0.0
    %52 = vmatprep.subr.mxu0 0.0
    %53 = vmatpush1.xpose.msra.mxu0 0.0
    %54 = vmatprep.subr.mxu0 0.0
    %55 = vmatpush1.xpose.msra.mxu0 0.0
    %56 = vmatprep.subr.mxu0 0.0
    %57 = vmatpush1.xpose.msra.mxu0 0.0
    %58 = vmatprep.subr.mxu0 0.0
    %59 = vmatpush1.xpose.msra.mxu0 0.0
    %60 = vmatprep.subr.mxu0 %v22
    %61 = vmatpush1.xpose.msra.mxu0 %v21
    %62 = vmatprep.subr.mxu0 0.0
    %63 = vmatpush2.xpose.msra.mxu0 0.0
    %64 = vmatprep.subr.mxu0 0.0
    %65 = vmatpush2.xpose.msra.mxu0 0.0
    %66 = vmatprep.subr.mxu0 0.0
    %67 = vmatpush2.xpose.msra.mxu0 0.0
    %68 = vmatprep.subr.mxu0 0.0
    %69 = vmatpush2.xpose.msra.mxu0 0.0
    %70 = vmatprep.subr.mxu0 0.0
    %71 = vmatpush2.xpose.msra.mxu0 0.0
    %72 = vmatprep.subr.mxu0 0.0
    %73 = vmatpush2.xpose.msra.mxu0 0.0
    %74 = vmatprep.subr.mxu0 0.0
    %75 = vmatpush2.xpose.msra.mxu0 0.0
    %76 = vmatprep.subr.mxu0 0.0
    %77 = vmatpush2.xpose.msra.mxu0 0.0
    %78 = vmatprep.subr.mxu0 0.0
    %79 = vmatpush2.xpose.msra.mxu0 0.0
    %80 = vmatprep.subr.mxu0 0.0
    %81 = vmatpush2.xpose.msra.mxu0 0.0
    %82 = vmatprep.subr.mxu0 0.0
    %83 = vmatpush2.xpose.msra.mxu0 0.0
    %84 = vmatprep.subr.mxu0 0.0
    %85 = vmatpush2.xpose.msra.mxu0 0.0
    %86 = vmatprep.subr.mxu0 0.0
    %87 = vmatpush2.xpose.msra.mxu0 0.0
    %88 = vmatprep.subr.mxu0 0.0
    %89 = vmatpush2.xpose.msra.mxu0 0.0
    %90 = vmatprep.subr.mxu0 0.0
    %91 = vmatpush2.xpose.msra.mxu0 0.0
    %92 = vmatprep.subr.mxu0 0.0
    %93 = vmatpush2.xpose.msra.mxu0 0.0
    %94 = vmatprep.mubr.f32.mxu0 %v22
    %95 = vmatmul.mubr.f32.gmra.mxu0 %v21
    %v96 = vpop.f32.mrf.mxu0
    %v97 = vadd.f32 0.0, %v96
    %v98 = vpop.f32.mrf.mxu0
    %99 = vdwg.mxu0
    %v100 = vadd.f32 %v29, %v97
    %vm101 = vcmask 64512
    %102 = vst.msk [vmem:[#allocation5] sm:$0xff] %vm101, %v100
    // Predicated region
    $region14: #{tpu_custom_call.1} parent=1 // pred_check
      %p103 = pneg %p23
    $region15: #{tpu_custom_call.1} parent=1 // pred_check_branch
      %105 = sbr.rel (%p103) target = $region17
    $region16: #{tpu_custom_call.1} parent=1 // pred_region
      %v106 = vld [vmem:[#allocation5] sm:$0xff]
      %v107 = vmul.f32 %v106, 0.00048828125
      %108 = vst.msk [vmem:[#allocation5] sm:$0xff] %vm101, %v107
    $region17: #{tpu_custom_call.1} parent=1 // pred_fallthru
      _
    // Predicated region
    $region18: #{tpu_custom_call.1} parent=1 // pred_check
      _
    $region19: #{tpu_custom_call.1} parent=1 // pred_check_branch
      %110 = sbr.rel (0) target = $region21
    $region20: #{tpu_custom_call.1} parent=1 // pred_region
      %s112 = ssub.s32 128, 128
      %113 = vsyncadd [#allocation4], %s112
      %s115 = sshll.u32 [#allocation5], 4
      %s116 = int_to_ptr.vmem [resolvable:$true] %s115
      %118 = dma.vmem_to_hbm [thread:$0]  %s116, 128, %s1, [#allocation4]
    $region21: #{tpu_custom_call.1} parent=1 // pred_fallthru
      _
    // Predicated region
    $region22: #{tpu_custom_call.1} parent=1 // pred_check
      _
    $region23: #{tpu_custom_call.1} parent=1 // pred_check_branch
      %120 = sbr.rel (0) target = $region25
    $region24: #{tpu_custom_call.1} parent=1 // pred_region
      %121 = dma.done [#allocation4], 128
    $region25: #{tpu_custom_call.1} parent=1 // pred_fallthru
      _
    %122 = vsyncpa [#allocation3], 1
    %123 = vsyncpa [#allocation4], 1

</llo_original>
